<compile_context>
chip_gen: v7x
topology: tpu7x:2x2x1
jax: 0.10.0
libtpu: 0.0.40
codegen_flags: <defaults>
</compile_context>

<pallas_src>
import jax
import jax.numpy as jnp
from jax.experimental import pallas as pl
from jax.experimental.pallas import tpu as pltpu

EPS = 1e-6
_MIN_GRID_STEPS = 8  # pipeline depth / 2-TC split headroom (v7x)


# ------------------------------ kernel ---------------------------------------

def _neck_kernel(x_ref, w_ref, g_ref, b_ref, o_ref):
    # x_ref: (TM, Cin)  w_ref: (Cin, Cout)  g_ref/b_ref: (1, Cout)  o_ref: (TM, Cout)
    # 1x1 conv (no bias) == row-wise matmul over channels; operands stay in the
    # streaming dtype (bf16 fast path), f32 accumulation on the MXU.
    y = jnp.dot(x_ref[...], w_ref[...], preferred_element_type=jnp.float32)

    # SamLayerNorm (channels_first): per spatial location, normalize over the
    # channel axis in f32 (torch does x.float()).  One-pass variance
    # (E[y^2]-u^2, clamped) + rsqrt on the EUP (free-ish slot).
    u = jnp.mean(y, axis=-1, keepdims=True)
    ex2 = jnp.mean(y * y, axis=-1, keepdims=True)
    var = jnp.maximum(ex2 - u * u, 0.0)
    inv = jax.lax.rsqrt(var + EPS)

    g = g_ref[...].astype(jnp.float32)
    b = b_ref[...].astype(jnp.float32)
    o_ref[...] = ((y - u) * inv * g + b).astype(o_ref.dtype)


# ------------------------------ wrapper ---------------------------------------

def _select_tm(rows, tm_target):
    """Pick a row-tile size.  Returns (tm, needs_pad).

    Prefers: (a) the full array when it fits one tile (no divisibility
    constraint), else (b) the largest multiple of 16 that divides `rows`
    while keeping >= _MIN_GRID_STEPS grid steps.  Only falls back to a
    padded tail when no clean divisor exists (never for SAM's B*4096 rows).
    """
    if rows <= tm_target:
        return rows, False
    cap = min(tm_target, max(16, rows // _MIN_GRID_STEPS))
    cap = max(16, (cap // 16) * 16)
    for t in range(cap, 15, -16):
        if rows % t == 0:
            return t, False
    return cap, True


def sam_neck_pallas(hidden_states_nhwc, conv_w, ln_gamma, ln_beta, *,
                    tm_target=1024, compute_dtype=jnp.bfloat16, out_dtype=None):
    """ShortSamVisionNeck on backbone features.

    hidden_states_nhwc: (B, H, W, Cin)   backbone output, NHWC
    conv_w:             (Cout, Cin)      PyTorch Conv2d weight (Cout,Cin,1,1) squeezed
    ln_gamma, ln_beta:  (Cout,)
    Returns (B, H, W, Cout) in `out_dtype` (defaults to the input dtype).
    """
    B, H, W, Cin = hidden_states_nhwc.shape
    Cout = conv_w.shape[0]
    if out_dtype is None:
        out_dtype = hidden_states_nhwc.dtype
    compute_dtype = jnp.dtype(compute_dtype)

    rows = B * H * W
    tm, needs_pad = _select_tm(rows, int(tm_target))

    # Cast the dominant HBM stream once in the wrapper (bf16 by default).  Under
    # jit this fuses into the producer of the backbone features, so the kernel's
    # HBM read is half-width.  Reshape (B,H,W,Cin)->(rows,Cin) is free.
    x2d = hidden_states_nhwc.astype(compute_dtype).reshape(rows, Cin)

    rows_pad = rows
    if needs_pad:
        # Rare fallback only (ragged row count with no multiple-of-16 divisor).
        # Zero tail rows -> matmul 0, var 0, output beta; sliced off below.
        rows_pad = pl.cdiv(rows, tm) * tm
        x2d = jnp.pad(x2d, ((0, rows_pad - rows), (0, 0)))

    # Weight cast once to the streaming dtype; transpose to (Cin, Cout).
    w_t = conv_w.astype(compute_dtype).T
    g2d = ln_gamma.reshape(1, Cout)
    b2d = ln_beta.reshape(1, Cout)

    # VMEM budget: double-buffered x/out tiles + weights + f32 LN intermediates
    # with headroom; clamp to [32 MiB, 64 MiB] (64 MiB == v7x physical VMEM).
    in_isz = compute_dtype.itemsize
    out_isz = jnp.dtype(out_dtype).itemsize
    need = (2 * tm * Cin * in_isz            # x tile, double-buffered
            + 2 * tm * Cout * out_isz        # out tile, double-buffered
            + 2 * Cin * Cout * in_isz        # resident weight (double-buffered)
            + 4 * Cout * 4                   # gamma / beta
            + 4 * tm * Cout * 4)             # f32 LayerNorm intermediates
    vmem_limit = int(min(max(32 * 1024 * 1024, int(need * 1.25)),
                         64 * 1024 * 1024))

    out2d = pl.pallas_call(
        _neck_kernel,
        out_shape=jax.ShapeDtypeStruct((rows_pad, Cout), out_dtype),
        grid_spec=pltpu.PrefetchScalarGridSpec(
            num_scalar_prefetch=0,
            grid=(rows_pad // tm,),
            in_specs=[
                pl.BlockSpec((tm, Cin), lambda i: (i, 0)),
                # Constant index_maps: fetched once, stay resident across the
                # streamed row tiles (no per-step re-DMA).
                pl.BlockSpec((Cin, Cout), lambda i: (0, 0)),
                pl.BlockSpec((1, Cout), lambda i: (0, 0)),
                pl.BlockSpec((1, Cout), lambda i: (0, 0)),
            ],
            out_specs=pl.BlockSpec((tm, Cout), lambda i: (i, 0)),
        ),
        compiler_params=pltpu.CompilerParams(
            dimension_semantics=("parallel",),   # required for v7x 2-TC split
            vmem_limit_bytes=vmem_limit,
        ),
    )(x2d, w_t, g2d, b2d)

    if rows_pad != rows:
        out2d = out2d[:rows]
    return out2d.reshape(B, H, W, Cout)


def _pixel_unshuffle_nhwc(feats, channels_last_output):
    """pixel_unshuffle(2) of NHWC features, matching torch's channel ordering
    (out channel = c*4 + i*2 + j)."""
    B, H, W, C = feats.shape
    assert H % 2 == 0 and W % 2 == 0, "pixel_unshuffle(2) needs even spatial dims"
    x = feats.reshape(B, H // 2, 2, W // 2, 2, C)          # (b, hh, i, ww, j, c)
    if channels_last_output:
        # (B, H/2, W/2, 4C): skips the NCHW transpose (one fewer full HBM pass)
        # for downstream consumers that accept channels-last.
        x = jnp.transpose(x, (0, 1, 3, 5, 2, 4))           # (b, hh, ww, c, i, j)
        return x.reshape(B, H // 2, W // 2, C * 4)
    # torch layout (B, 4C, H/2, W/2): single fused transpose from NHWC.
    x = jnp.transpose(x, (0, 5, 2, 4, 1, 3))               # (b, c, i, j, hh, ww)
    return x.reshape(B, C * 4, H // 2, W // 2)


def sam_vision_tower_forward(hidden_states_nhwc, conv_w, ln_gamma, ln_beta,
                             pixel_shuffle=False, *, tm_target=1024,
                             compute_dtype=jnp.bfloat16, out_dtype=None,
                             channels_last_output=False):
    """Mirrors SAMVisionTower.forward for a batched (non-list) input, starting
    from the backbone features (B, H, W, hidden_size).  Run under jit so the
    weight cast/transpose and reshapes constant-fold / fuse."""
    feats = sam_neck_pallas(hidden_states_nhwc, conv_w, ln_gamma, ln_beta,
                            tm_target=tm_target, compute_dtype=compute_dtype,
                            out_dtype=out_dtype)
    B, H, W, C = feats.shape
    if pixel_shuffle:
        return _pixel_unshuffle_nhwc(feats, channels_last_output)
    # .last_hidden_state.flatten(start_dim=1, end_dim=2) -> (B, H*W, C); free reshape.
    return feats.reshape(B, H * W, C)


# ------------------------- pure-JAX references -------------------------------

def _neck_reference(x_nhwc, conv_w, g, b):
    x = x_nhwc.astype(jnp.float32)
    y = jnp.einsum("bhwc,oc->bhwo", x, conv_w.astype(jnp.float32))
    u = jnp.mean(y, axis=-1, keepdims=True)
    s = jnp.mean((y - u) ** 2, axis=-1, keepdims=True)
    yn = (y - u) / jnp.sqrt(s + EPS)
    return g.astype(jnp.float32) * yn + b.astype(jnp.float32)


def _pixel_unshuffle_ref(feats_nhwc):
    # Mimics the torch path: flatten -> NCHW -> F.pixel_unshuffle(2).
    B, H, W, C = feats_nhwc.shape
    x = jnp.transpose(feats_nhwc.reshape(B, H * W, C), (0, 2, 1)).reshape(B, C, H, W)
    x = x.reshape(B, C, H // 2, 2, W // 2, 2)
    return jnp.transpose(x, (0, 1, 3, 5, 2, 4)).reshape(B, C * 4, H // 2, W // 2)


# ------------------------------ test ------------------------------------------

if __name__ == "__main__":
    # Small, forward-consistent shapes (real SAM ViT-L: hidden=1024, out=256, 64x64).
    B, H, W = 2, 16, 16
    HIDDEN = 64        # config.hidden_size (backbone feature dim)
    OUT_CH = 32        # config.output_channels

    key = jax.random.PRNGKey(0)
    k_x, k_w, k_g, k_b, k_x2 = jax.random.split(key, 5)

    hidden_states = jax.random.normal(k_x, (B, H, W, HIDDEN), dtype=jnp.float32)
    conv_w = jax.random.normal(k_w, (OUT_CH, HIDDEN), dtype=jnp.float32) * 0.05
    ln_gamma = jnp.ones((OUT_CH,), jnp.float32) + 0.01 * jax.random.normal(k_g, (OUT_CH,))
    ln_beta = 0.01 * jax.random.normal(k_b, (OUT_CH,))

    fwd = jax.jit(sam_vision_tower_forward,
                  static_argnames=("pixel_shuffle", "tm_target", "compute_dtype",
                                   "out_dtype", "channels_last_output"))

    ref_feats = _neck_reference(hidden_states, conv_w, ln_gamma, ln_beta)
    ref_flat = ref_feats.reshape(B, H * W, OUT_CH)

    # 1) f32 compute path, small tm_target -> multi-step grid, exact tiling (no pad).
    out_f32 = jax.block_until_ready(
        fwd(hidden_states, conv_w, ln_gamma, ln_beta,
            pixel_shuffle=False, tm_target=128, compute_dtype=jnp.float32))
    assert out_f32.shape == (B, H * W, OUT_CH)
    assert jnp.allclose(out_f32, ref_flat, atol=1e-4, rtol=1e-4)

    # 2) default bf16 fast path: f32 input is cast to bf16 in the wrapper,
    #    f32 MXU accumulation, output back in the input dtype.
    out_bf16 = jax.block_until_ready(
        fwd(hidden_states, conv_w, ln_gamma, ln_beta, pixel_shuffle=False))
    assert out_bf16.shape == (B, H * W, OUT_CH)
    assert out_bf16.dtype == jnp.float32
    assert jnp.allclose(out_bf16, ref_flat, atol=5e-2, rtol=5e-2)

    # 3) ragged row count -> padded-tail fallback path (rare in practice).
    hs_odd = jax.random.normal(k_x2, (1, 10, 13, HIDDEN), dtype=jnp.float32)
    ref_odd = _neck_reference(hs_odd, conv_w, ln_gamma, ln_beta).reshape(1, 130, OUT_CH)
    out_odd = jax.block_until_ready(
        fwd(hs_odd, conv_w, ln_gamma, ln_beta,
            pixel_shuffle=False, tm_target=48, compute_dtype=jnp.float32))
    assert out_odd.shape == (1, 130, OUT_CH)
    assert jnp.allclose(out_odd, ref_odd, atol=1e-4, rtol=1e-4)

    # 4) pixel_unshuffle: torch NCHW layout (default) and fused channels-last.
    ref_ps = _pixel_unshuffle_ref(ref_feats)
    out_ps = jax.block_until_ready(
        fwd(hidden_states, conv_w, ln_gamma, ln_beta,
            pixel_shuffle=True, compute_dtype=jnp.float32))
    assert out_ps.shape == (B, OUT_CH * 4, H // 2, W // 2)
    assert jnp.allclose(out_ps, ref_ps, atol=1e-4, rtol=1e-4)

    out_cl = jax.block_until_ready(
        fwd(hidden_states, conv_w, ln_gamma, ln_beta,
            pixel_shuffle=True, compute_dtype=jnp.float32,
            channels_last_output=True))
    assert out_cl.shape == (B, H // 2, W // 2, OUT_CH * 4)
    assert jnp.allclose(jnp.transpose(out_cl, (0, 3, 1, 2)), ref_ps,
                        atol=1e-4, rtol=1e-4)

    print("KERNEL_OK")
</pallas_src>

<mosaic_0001>
module attributes {stable_mosaic.version = 11 : i64} {
  func.func @_neck_kernel(%arg0: i32, %arg1: memref<64x64xf32, #tpu.memory_space<vmem>>, %arg2: memref<64x32xf32, #tpu.memory_space<vmem>>, %arg3: memref<1x32xf32, #tpu.memory_space<vmem>>, %arg4: memref<1x32xf32, #tpu.memory_space<vmem>>, %arg5: memref<64x32xf32, #tpu.memory_space<vmem>>) attributes {dimension_semantics = [#tpu.dimension_semantics<parallel>], iteration_bounds = array<i64: 8>, scalar_prefetch = 0 : i64, scratch_operands = 0 : i64, tpu.core_type = #tpu.core_type<tc>, window_params = [{transform_indices = @transform_0, window_bounds = array<i64: 64, 64>}, {pipeline_mode = #tpu.pipeline_mode<synchronous>, transform_indices = @transform_1, window_bounds = array<i64: 64, 32>}, {pipeline_mode = #tpu.pipeline_mode<synchronous>, transform_indices = @transform_2, window_bounds = array<i64: 1, 32>}, {pipeline_mode = #tpu.pipeline_mode<synchronous>, transform_indices = @transform_3, window_bounds = array<i64: 1, 32>}, {transform_indices = @transform_4, window_bounds = array<i64: 64, 32>}]} {
    %c0 = arith.constant 0 : index
    %c0_0 = arith.constant 0 : index
    %0 = vector.load %arg1[%c0, %c0_0] : memref<64x64xf32, #tpu.memory_space<vmem>>, vector<64x64xf32>
    %c0_1 = arith.constant 0 : index
    %c0_2 = arith.constant 0 : index
    %1 = vector.load %arg2[%c0_1, %c0_2] : memref<64x32xf32, #tpu.memory_space<vmem>>, vector<64x32xf32>
    %cst = arith.constant dense<0.000000e+00> : vector<64x32xf32>
    %2 = tpu.matmul %0, %1, %cst {dimension_numbers = #tpu.dot_dimension_numbers<[1], [0], [0], [1], [0, 0, 1, 1], [], []>} : vector<64x64xf32>, vector<64x32xf32>, vector<64x32xf32> -> vector<64x32xf32>
    %cst_3 = arith.constant dense<0.000000e+00> : vector<64xf32>
    %3 = vector.multi_reduction <add>, %2, %cst_3 [1] : vector<64x32xf32> to vector<64xf32>
    %4 = vector.shape_cast %3 : vector<64xf32> to vector<64x1xf32>
    %cst_4 = arith.constant 3.200000e+01 : f32
    %5 = vector.broadcast %cst_4 : f32 to vector<64x1xf32>
    %6 = arith.divf %4, %5 : vector<64x1xf32>
    %7 = arith.mulf %2, %2 : vector<64x32xf32>
    %cst_5 = arith.constant dense<0.000000e+00> : vector<64xf32>
    %8 = vector.multi_reduction <add>, %7, %cst_5 [1] : vector<64x32xf32> to vector<64xf32>
    %9 = vector.shape_cast %8 : vector<64xf32> to vector<64x1xf32>
    %cst_6 = arith.constant 3.200000e+01 : f32
    %10 = vector.broadcast %cst_6 : f32 to vector<64x1xf32>
    %11 = arith.divf %9, %10 : vector<64x1xf32>
    %12 = arith.mulf %6, %6 : vector<64x1xf32>
    %13 = arith.subf %11, %12 : vector<64x1xf32>
    %cst_7 = arith.constant 0.000000e+00 : f32
    %14 = vector.broadcast %cst_7 : f32 to vector<64x1xf32>
    %15 = arith.maximumf %13, %14 : vector<64x1xf32>
    %cst_8 = arith.constant 9.99999997E-7 : f32
    %16 = vector.broadcast %cst_8 : f32 to vector<64x1xf32>
    %17 = arith.addf %15, %16 : vector<64x1xf32>
    %18 = math.rsqrt %17 : vector<64x1xf32>
    %c0_9 = arith.constant 0 : index
    %c0_10 = arith.constant 0 : index
    %19 = vector.load %arg3[%c0_9, %c0_10] : memref<1x32xf32, #tpu.memory_space<vmem>>, vector<1x32xf32>
    %c0_11 = arith.constant 0 : index
    %c0_12 = arith.constant 0 : index
    %20 = vector.load %arg4[%c0_11, %c0_12] : memref<1x32xf32, #tpu.memory_space<vmem>>, vector<1x32xf32>
    %21 = vector.broadcast %6 : vector<64x1xf32> to vector<64x32xf32>
    %22 = arith.subf %2, %21 : vector<64x32xf32>
    %23 = vector.broadcast %18 : vector<64x1xf32> to vector<64x32xf32>
    %24 = arith.mulf %22, %23 : vector<64x32xf32>
    %25 = vector.broadcast %19 : vector<1x32xf32> to vector<64x32xf32>
    %26 = arith.mulf %24, %25 : vector<64x32xf32>
    %27 = vector.broadcast %20 : vector<1x32xf32> to vector<64x32xf32>
    %28 = arith.addf %26, %27 : vector<64x32xf32>
    %c0_13 = arith.constant 0 : index
    %c0_14 = arith.constant 0 : index
    %29 = vector.load %arg5[%c0_13, %c0_14] : memref<64x32xf32, #tpu.memory_space<vmem>>, vector<64x32xf32>
    tpu.vector_store %arg5[%c0_13, %c0_14], %28 {strides = array<i32>} : memref<64x32xf32, #tpu.memory_space<vmem>>, vector<64x32xf32>,
    return
  }
  func.func @transform_0(%arg0: i32) -> (i32, i32) {
    %c0_i32 = arith.constant 0 : i32
    %c0_i32_0 = arith.constant 0 : i32
    return %arg0, %c0_i32 : i32, i32
  }
  func.func @transform_1(%arg0: i32) -> (i32, i32) {
    %c0_i32 = arith.constant 0 : i32
    %c0_i32_0 = arith.constant 0 : i32
    %c0_i32_1 = arith.constant 0 : i32
    return %c0_i32, %c0_i32_0 : i32, i32
  }
  func.func @transform_2(%arg0: i32) -> (i32, i32) {
    %c0_i32 = arith.constant 0 : i32
    %c0_i32_0 = arith.constant 0 : i32
    %c0_i32_1 = arith.constant 0 : i32
    return %c0_i32, %c0_i32_0 : i32, i32
  }
  func.func @transform_3(%arg0: i32) -> (i32, i32) {
    %c0_i32 = arith.constant 0 : i32
    %c0_i32_0 = arith.constant 0 : i32
    %c0_i32_1 = arith.constant 0 : i32
    return %c0_i32, %c0_i32_0 : i32, i32
  }
  func.func @transform_4(%arg0: i32) -> (i32, i32) {
    %c0_i32 = arith.constant 0 : i32
    %c0_i32_0 = arith.constant 0 : i32
    return %arg0, %c0_i32 : i32, i32
  }
}

</mosaic_0001>

<llo_original>
// kernel: sam_vision_tower_forward.1
$region0: #{sam_vision_tower_forward.1}
  #allocation0 [shape = 'u32[]', space=smem, size = 0x4, offset = 0x4, fixed_abs, tag = 'smem constant byte address 0x4 - core index']
  #allocation1 [shape = 'u32[144,128]{1,0:T(1,128)}', space=vmem, size = 0x12000, scoped, tag = 'internal scratch']
  %s0 = inlined_call_operand.hbm [shape: f32[512,64], index: 0, kind: input, shape index: {}]
  %s1 = inlined_call_operand.vmem [shape: f32[64,32], index: 1, kind: input, shape index: {}]
  %s2 = inlined_call_operand.vmem [shape: f32[1,32], index: 2, kind: input, shape index: {}]
  %s3 = inlined_call_operand.vmem [shape: f32[1,32], index: 3, kind: input, shape index: {}]
  %s4 = inlined_call_operand.vmem [shape: f32[512,32], index: 4, kind: output, shape index: {}]
  %s5 = sld [smem:[#allocation0]]
  $region53: #{sam_vision_tower_forward.1} parent=0
    _
  %s7 = ssub.s32 1, %s5
  %s8 = scalar_select 0, %s7, %s5
  $region1: #{sam_vision_tower_forward.1} parent=0
    #allocation2 [shape = 'u8[65536]{0}', space=vmem, size = 0x10000, scoped, tag = 'input window, operand 0']
    #allocation3 [shape = 's32[2]{0}', space=sflag, size = 0x8, scoped, tag = 'scoped memory for sam_vision_tower_forward.1']
    %9 = vsyncpa [#allocation3], 0
    %s10 = scalar_lea.sflag [#allocation3], 1
    %11 = vsyncpa %s10, 0
    loop: start=0, step=1, limit=10
    $region2: #{sam_vision_tower_forward.1} parent=1 // loop_pre_header
      _
    $region3: #{sam_vision_tower_forward.1} parent=1 // loop_header
      %s13 = sphi 0, %s17
      %p14 = scmp.ge.s32.totalorder %s13, 10
      %s23 = sphi 0, %s25
      %s26 = sphi 0, %s23
      %s27 = sphi 0, %s26
      %s43 = sphi 0, %s27
      %s47 = sphi 0, %s47
      %s49 = sphi 0, %s47
      %s50 = sphi 0, %s49
      %s64 = sphi 0, %s50
      %s68 = sphi 0, %s68
      %s70 = sphi 0, %s68
      %s71 = sphi 0, %s70
      %s85 = sphi 0, %s71
      %s89 = sphi 0, %s89
      %s91 = sphi 0, %s89
      %s92 = sphi 0, %s91
      %s106 = sphi 0, %s92
      %s112 = sphi 0, %s114
      %s115 = sphi 0, %s112
      %s116 = sphi 0, %s115
      %s132 = sphi 0, %s116
    $region4: #{sam_vision_tower_forward.1} parent=1 // loop_header_branch
      %16 = sbr.rel (%p14) target = $region8
    $region5: #{sam_vision_tower_forward.1} parent=1 // loop_body
      %s18 = ssub.s32 %s13, 1
      %s19 = ssub.s32 %s13, 2
      %s20 = sadd.s32 %s13, 1
      %s21 = ssub.s32 %s13, %s20
      %p22 = scmp.eq.s32.totalorder %s21, 0
      %s24 = sadd.s32 %s23, 1
      %s25 = scalar_select %p22, %s23, %s24
      %p28 = pneg %p22
      %p29 = scmp.eq.s32.totalorder %s13, 7
      %p30 = por %p28, %p29
      %p31 = scmp.ne.s32.totalorder %s23, %s26
      %p32 = scmp.eq.s32.totalorder %s13, 0
      %p33 = por %p31, %p32
      %p34 = scmp.ne.s32.totalorder %s23, %s26
      %p35 = scmp.eq.s32.totalorder %s18, 7
      %p36 = por %p34, %p35
      %p37 = scmp.ne.s32.totalorder %s26, %s27
      %p38 = scmp.eq.s32.totalorder %s18, 0
      %p39 = por %p37, %p38
      %p40 = scmp.ne.s32.totalorder %s26, %s27
      %p41 = scmp.eq.s32.totalorder %s19, 7
      %p42 = por %p40, %p41
      %p44 = scmp.ne.s32.totalorder %s27, %s43
      %p45 = scmp.eq.s32.totalorder %s19, 0
      %p46 = por %p44, %p45
      %s48 = sadd.s32 %s47, 1
      %p51 = scmp.eq.s32.totalorder %s13, 7
      %p52 = scmp.ne.s32.totalorder %s47, %s49
      %p53 = scmp.eq.s32.totalorder %s13, 0
      %p54 = por %p52, %p53
      %p55 = scmp.ne.s32.totalorder %s47, %s49
      %p56 = scmp.eq.s32.totalorder %s18, 7
      %p57 = por %p55, %p56
      %p58 = scmp.ne.s32.totalorder %s49, %s50
      %p59 = scmp.eq.s32.totalorder %s18, 0
      %p60 = por %p58, %p59
      %p61 = scmp.ne.s32.totalorder %s49, %s50
      %p62 = scmp.eq.s32.totalorder %s19, 7
      %p63 = por %p61, %p62
      %p65 = scmp.ne.s32.totalorder %s50, %s64
      %p66 = scmp.eq.s32.totalorder %s19, 0
      %p67 = por %p65, %p66
      %s69 = sadd.s32 %s68, 1
      %p72 = scmp.eq.s32.totalorder %s13, 7
      %p73 = scmp.ne.s32.totalorder %s68, %s70
      %p74 = scmp.eq.s32.totalorder %s13, 0
      %p75 = por %p73, %p74
      %p76 = scmp.ne.s32.totalorder %s68, %s70
      %p77 = scmp.eq.s32.totalorder %s18, 7
      %p78 = por %p76, %p77
      %p79 = scmp.ne.s32.totalorder %s70, %s71
      %p80 = scmp.eq.s32.totalorder %s18, 0
      %p81 = por %p79, %p80
      %p82 = scmp.ne.s32.totalorder %s70, %s71
      %p83 = scmp.eq.s32.totalorder %s19, 7
      %p84 = por %p82, %p83
      %p86 = scmp.ne.s32.totalorder %s71, %s85
      %p87 = scmp.eq.s32.totalorder %s19, 0
      %p88 = por %p86, %p87
      %s90 = sadd.s32 %s89, 1
      %p93 = scmp.eq.s32.totalorder %s13, 7
      %p94 = scmp.ne.s32.totalorder %s89, %s91
      %p95 = scmp.eq.s32.totalorder %s13, 0
      %p96 = por %p94, %p95
      %p97 = scmp.ne.s32.totalorder %s89, %s91
      %p98 = scmp.eq.s32.totalorder %s18, 7
      %p99 = por %p97, %p98
      %p100 = scmp.ne.s32.totalorder %s91, %s92
      %p101 = scmp.eq.s32.totalorder %s18, 0
      %p102 = por %p100, %p101
      %p103 = scmp.ne.s32.totalorder %s91, %s92
      %p104 = scmp.eq.s32.totalorder %s19, 7
      %p105 = por %p103, %p104
      %p107 = scmp.ne.s32.totalorder %s92, %s106
      %p108 = scmp.eq.s32.totalorder %s19, 0
      %p109 = por %p107, %p108
      %s110 = ssub.s32 %s13, %s20
      %p111 = scmp.eq.s32.totalorder %s110, 0
      %s113 = sadd.s32 %s112, 1
      %s114 = scalar_select %p111, %s112, %s113
      %p117 = pneg %p111
      %p118 = scmp.eq.s32.totalorder %s13, 7
      %p119 = por %p117, %p118
      %p120 = scmp.ne.s32.totalorder %s112, %s115
      %p121 = scmp.eq.s32.totalorder %s13, 0
      %p122 = por %p120, %p121
      %p123 = scmp.ne.s32.totalorder %s112, %s115
      %p124 = scmp.eq.s32.totalorder %s18, 7
      %p125 = por %p123, %p124
      %p126 = scmp.ne.s32.totalorder %s115, %s116
      %p127 = scmp.eq.s32.totalorder %s18, 0
      %p128 = por %p126, %p127
      %p129 = scmp.ne.s32.totalorder %s115, %s116
      %p130 = scmp.eq.s32.totalorder %s19, 7
      %p131 = por %p129, %p130
      %p133 = scmp.ne.s32.totalorder %s116, %s132
      %p134 = scmp.eq.s32.totalorder %s19, 0
      %p135 = por %p133, %p134
      %p136 = scmp.le.s32.totalorder 1, %s13
      %p137 = scmp.lt.s32.totalorder %s13, 9
      %p138 = pnand %p136, %p137
      %p139 = pneg %p138
      // Predicated region
      $region9: #{sam_vision_tower_forward.1} parent=5 // pred_check
        _
      $region10: #{sam_vision_tower_forward.1} parent=5 // pred_check_branch
        %141 = sbr.rel (%p138) target = $region12
      $region11: #{sam_vision_tower_forward.1} parent=5 // pred_region
        %s142 = ssub.s32 %s13, 1
        // Predicated region
        $region13: #{sam_vision_tower_forward.1} parent=11 // pred_check
          %p143 = pneg %p60
        $region14: #{sam_vision_tower_forward.1} parent=11 // pred_check_branch
          %145 = sbr.rel (%p143) target = $region16
        $region15: #{sam_vision_tower_forward.1} parent=11 // pred_region
          _
        $region16: #{sam_vision_tower_forward.1} parent=11 // pred_fallthru
          _
        // Predicated region
        $region17: #{sam_vision_tower_forward.1} parent=11 // pred_check
          %p146 = pneg %p81
        $region18: #{sam_vision_tower_forward.1} parent=11 // pred_check_branch
          %148 = sbr.rel (%p146) target = $region20
        $region19: #{sam_vision_tower_forward.1} parent=11 // pred_region
          _
        $region20: #{sam_vision_tower_forward.1} parent=11 // pred_fallthru
          _
        // Predicated region
        $region21: #{sam_vision_tower_forward.1} parent=11 // pred_check
          %p149 = pneg %p102
        $region22: #{sam_vision_tower_forward.1} parent=11 // pred_check_branch
          %151 = sbr.rel (%p149) target = $region24
        $region23: #{sam_vision_tower_forward.1} parent=11 // pred_region
          _
        $region24: #{sam_vision_tower_forward.1} parent=11 // pred_fallthru
          _
      $region12: #{sam_vision_tower_forward.1} parent=5 // pred_fallthru
        _
      %p152 = scmp.lt.s32.totalorder %s13, 8
      // Predicated region
      $region25: #{sam_vision_tower_forward.1} parent=5 // pred_check
        %p153 = pneg %p152
      $region26: #{sam_vision_tower_forward.1} parent=5 // pred_check_branch
        %155 = sbr.rel (%p153) target = $region28
      $region27: #{sam_vision_tower_forward.1} parent=5 // pred_region
        // Predicated region
        $region29: #{sam_vision_tower_forward.1} parent=27 // pred_check
          %p156 = pneg %p33
        $region30: #{sam_vision_tower_forward.1} parent=27 // pred_check_branch
          %158 = sbr.rel (%p156) target = $region32
        $region31: #{sam_vision_tower_forward.1} parent=27 // pred_region
          %s159 = sand.u32 %s23, 1
          %s160 = scalar_lea.sflag [#allocation3], %s159
          %s161 = sand.u32 %s23, 1
          %s162 = smul.addr %s161, 64
          %s163 = scalar_lea.vmem [#allocation2], %s162
          %s164 = smul.u32 8, %s13
          %s166 = ssub.s32 1024, 1024
          %167 = vsyncadd %s160, %s166
          %s168 = smul.addr %s164, 128
          %s169 = scalar_lea.hbm %s0, %s168
          %s170 = sshll.u32 %s163, 4
          %s171 = int_to_ptr.vmem [resolvable:$true] %s170
          %176 = dma.hbm_to_vmem [thread:$0]  %s169, 1024, %s171, %s160, 128, 128, 8
        $region32: #{sam_vision_tower_forward.1} parent=27 // pred_fallthru
          _
      $region28: #{sam_vision_tower_forward.1} parent=5 // pred_fallthru
        _
      %p177 = scmp.le.s32.totalorder 1, %s13
      %p178 = scmp.lt.s32.totalorder %s13, 9
      %p179 = pnand %p177, %p178
      %p180 = pneg %p179
      // Predicated region
      $region33: #{sam_vision_tower_forward.1} parent=5 // pred_check
        _
      $region34: #{sam_vision_tower_forward.1} parent=5 // pred_check_branch
        %182 = sbr.rel (%p179) target = $region36
      $region35: #{sam_vision_tower_forward.1} parent=5 // pred_region
        %s183 = ssub.s32 %s13, 1
        %s184 = sand.u32 %s26, 1
        %s185 = scalar_lea.sflag [#allocation3], %s184
        %s186 = sand.u32 %s26, 1
        %s187 = smul.addr %s186, 64
        %s188 = scalar_lea.vmem [#allocation2], %s187
        // Predicated region
        $region37: #{sam_vision_tower_forward.1} parent=35 // pred_check
          %p189 = pneg %p39
        $region38: #{sam_vision_tower_forward.1} parent=35 // pred_check_branch
          %191 = sbr.rel (%p189) target = $region40
        $region39: #{sam_vision_tower_forward.1} parent=35 // pred_region
          %192 = dma.done %s185, 1024
        $region40: #{sam_vision_tower_forward.1} parent=35 // pred_fallthru
          _
        %s193 = sand.u32 %s26, 1
        %s194 = scalar_lea.sflag [#allocation3], %s193
        %s195 = sand.u32 %s26, 1
        %s196 = smul.addr %s195, 64
        %s197 = scalar_lea.vmem [#allocation2], %s196
        %p198 = pneg %p39
        %p199 = pneg %p36
        %p200 = pneg %p60
        %p201 = pneg %p57
        %p202 = pneg %p81
        %p203 = pneg %p78
        %p204 = pneg %p102
        %p205 = pneg %p99
        %p206 = pneg %p128
        %p207 = pneg %p125
        %s208 = smul.u32 8, %s18
        %p209 = scmp.lt.s32.totalorder %s208, 63
        %s210 = scalar_select %p209, %s208, 63
        %s211 = smul.addr %s210, 8
        %s212 = scalar_lea.vmem %s4, %s211
        %s213 = smul.u32 8, %s18
        %s214 = smul.u32 8, %s18
        %p215 = scmp.lt.s32.totalorder %s214, 63
        %s216 = scalar_select %p215, %s214, 63
        %s217 = smul.addr %s216, 8
        %s218 = scalar_lea.vmem %s4, %s217
        %s219 = smul.u32 8, %s18
        %v220 = vld [vmem:[%s188] sm:$0xff]
        %v221 = vld [vmem:[%s188 + $0x8] sm:$0xff]
        %v222 = vld [vmem:[%s188 + $0x10] sm:$0xff]
        %v223 = vld [vmem:[%s188 + $0x18] sm:$0xff]
        %v224 = vld [vmem:[%s188 + $0x20] sm:$0xff]
        %v225 = vld [vmem:[%s188 + $0x28] sm:$0xff]
        %v226 = vld [vmem:[%s188 + $0x30] sm:$0xff]
        %v227 = vld [vmem:[%s188 + $0x38] sm:$0xff]
        %v228 = vld [vmem:[%s1] sm:$0xff]
        %v229 = vld [vmem:[%s1 + $0x8] sm:$0xff]
        %v230 = vld [vmem:[%s1 + $0x10] sm:$0xff]
        %v231 = vld [vmem:[%s1 + $0x18] sm:$0xff]
        %v232 = vld [vmem:[%s1 + $0x20] sm:$0xff]
        %v233 = vld [vmem:[%s1 + $0x28] sm:$0xff]
        %v234 = vld [vmem:[%s1 + $0x30] sm:$0xff]
        %v235 = vld [vmem:[%s1 + $0x38] sm:$0xff]
        %vm236 = vcmask 523264
        %v238 = vsel %vm236, %v220, 0
        %v241 = vsel %vm236, %v221, 0
        %v244 = vsel %vm236, %v222, 0
        %v247 = vsel %vm236, %v223, 0
        %v250 = vsel %vm236, %v224, 0
        %v253 = vsel %vm236, %v225, 0
        %v256 = vsel %vm236, %v226, 0
        %v259 = vsel %vm236, %v227, 0
        %261 = vmatprep.subr.mxu0 0.0
        %262 = vmatpush1.msra.mxu0 %v228
        %263 = vmatprep.subr.mxu0 0.0
        %264 = vmatpush1.msra.mxu0 %v229
        %265 = vmatprep.subr.mxu0 0.0
        %266 = vmatpush1.msra.mxu0 %v230
        %267 = vmatprep.subr.mxu0 0.0
        %268 = vmatpush1.msra.mxu0 %v231
        %269 = vmatprep.subr.mxu0 0.0
        %270 = vmatpush1.msra.mxu0 %v232
        %271 = vmatprep.subr.mxu0 0.0
        %272 = vmatpush1.msra.mxu0 %v233
        %273 = vmatprep.subr.mxu0 0.0
        %274 = vmatpush1.msra.mxu0 %v234
        %275 = vmatprep.subr.mxu0 0.0
        %276 = vmatpush1.msra.mxu0 %v235
        %277 = vmatprep.subr.mxu0 0.0
        %278 = vmatpush1.msra.mxu0 0.0
        %279 = vmatprep.subr.mxu0 0.0
        %280 = vmatpush1.msra.mxu0 0.0
        %281 = vmatprep.subr.mxu0 0.0
        %282 = vmatpush1.msra.mxu0 0.0
        %283 = vmatprep.subr.mxu0 0.0
        %284 = vmatpush1.msra.mxu0 0.0
        %285 = vmatprep.subr.mxu0 0.0
        %286 = vmatpush1.msra.mxu0 0.0
        %287 = vmatprep.subr.mxu0 0.0
        %288 = vmatpush1.msra.mxu0 0.0
        %289 = vmatprep.subr.mxu0 0.0
        %290 = vmatpush1.msra.mxu0 0.0
        %291 = vmatprep.subr.mxu0 0.0
        %292 = vmatpush1.msra.mxu0 0.0
        %293 = vmatprep.subr.mxu0 0.0
        %294 = vmatpush1.msra.mxu0 0.0
        %295 = vmatprep.subr.mxu0 0.0
        %296 = vmatpush1.msra.mxu0 0.0
        %297 = vmatprep.subr.mxu0 0.0
        %298 = vmatpush1.msra.mxu0 0.0
        %299 = vmatprep.subr.mxu0 0.0
        %300 = vmatpush1.msra.mxu0 0.0
        %301 = vmatprep.subr.mxu0 0.0
        %302 = vmatpush1.msra.mxu0 0.0
        %303 = vmatprep.subr.mxu0 0.0
        %304 = vmatpush1.msra.mxu0 0.0
        %305 = vmatprep.subr.mxu0 0.0
        %306 = vmatpush1.msra.mxu0 0.0
        %307 = vmatprep.subr.mxu0 0.0
        %308 = vmatpush1.msra.mxu0 0.0
        %309 = vmatprep.subr.mxu0 0.0
        %310 = vmatpush1.msra.mxu0 0.0
        %311 = vmatprep.subr.mxu0 0.0
        %312 = vmatpush1.msra.mxu0 0.0
        %313 = vmatprep.subr.mxu0 0.0
        %314 = vmatpush1.msra.mxu0 0.0
        %315 = vmatprep.subr.mxu0 0.0
        %316 = vmatpush1.msra.mxu0 0.0
        %317 = vmatprep.subr.mxu0 0.0
        %318 = vmatpush1.msra.mxu0 0.0
        %319 = vmatprep.subr.mxu0 0.0
        %320 = vmatpush1.msra.mxu0 0.0
        %321 = vmatprep.subr.mxu0 0.0
        %322 = vmatpush1.msra.mxu0 0.0
        %323 = vmatprep.subr.mxu0 0.0
        %324 = vmatpush1.msra.mxu0 0.0
        %325 = vmatprep.mubr.f32.mxu0 0.0
        %326 = vmatmul.mubr.f32.gmra.mrb[0].mxu0 %v238
        %v327 = vpop.f32.mrb[0].mxu0
        %v328 = vadd.f32 0.0, %v327
        %v329 = vpop.f32.mrb[0].mxu0
        %330 = vmatprep.mubr.f32.mxu0 0.0
        %331 = vmatmul.mubr.f32.gmra.mrb[0].mxu0 %v241
        %v332 = vpop.f32.mrb[0].mxu0
        %v333 = vadd.f32 0.0, %v332
        %v334 = vpop.f32.mrb[0].mxu0
        %335 = vmatprep.mubr.f32.mxu0 0.0
        %336 = vmatmul.mubr.f32.gmra.mrb[0].mxu0 %v244
        %v337 = vpop.f32.mrb[0].mxu0
        %v338 = vadd.f32 0.0, %v337
        %v339 = vpop.f32.mrb[0].mxu0
        %340 = vmatprep.mubr.f32.mxu0 0.0
        %341 = vmatmul.mubr.f32.gmra.mrb[0].mxu0 %v247
        %v342 = vpop.f32.mrb[0].mxu0
        %v343 = vadd.f32 0.0, %v342
        %v344 = vpop.f32.mrb[0].mxu0
        %345 = vmatprep.mubr.f32.mxu0 0.0
        %346 = vmatmul.mubr.f32.gmra.mrb[0].mxu0 %v250
        %v347 = vpop.f32.mrb[0].mxu0
        %v348 = vadd.f32 0.0, %v347
        %v349 = vpop.f32.mrb[0].mxu0
        %350 = vmatprep.mubr.f32.mxu0 0.0
        %351 = vmatmul.mubr.f32.gmra.mrb[0].mxu0 %v253
        %v352 = vpop.f32.mrb[0].mxu0
        %v353 = vadd.f32 0.0, %v352
        %v354 = vpop.f32.mrb[0].mxu0
        %355 = vmatprep.mubr.f32.mxu0 0.0
        %356 = vmatmul.mubr.f32.gmra.mrb[0].mxu0 %v256
        %v357 = vpop.f32.mrb[0].mxu0
        %v358 = vadd.f32 0.0, %v357
        %v359 = vpop.f32.mrb[0].mxu0
        %360 = vmatprep.mubr.f32.mxu0 0.0
        %361 = vmatmul.mubr.f32.gmra.mrb[0].mxu0 %v259
        %v362 = vpop.f32.mrb[0].mxu0
        %v363 = vadd.f32 0.0, %v362
        %v364 = vpop.f32.mrb[0].mxu0
        %365 = vdwg.mxu0
        %vm366 = vcmask 261120
        %v367 = vsel %vm366, %v328, 0.0
        %368 = vadd.xlane.f32.xlu0 %v367
        %v369 = vpop.xlane.xlu0 %368
        %v370 = vsel %vm366, %v333, 0.0
        %371 = vadd.xlane.f32.xlu0 %v370
        %v372 = vpop.xlane.xlu0 %371
        %v373 = vsel %vm366, %v338, 0.0
        %374 = vadd.xlane.f32.xlu0 %v373
        %v375 = vpop.xlane.xlu0 %374
        %v376 = vsel %vm366, %v343, 0.0
        %377 = vadd.xlane.f32.xlu0 %v376
        %v378 = vpop.xlane.xlu0 %377
        %v379 = vsel %vm366, %v348, 0.0
        %380 = vadd.xlane.f32.xlu0 %v379
        %v381 = vpop.xlane.xlu0 %380
        %v382 = vsel %vm366, %v353, 0.0
        %383 = vadd.xlane.f32.xlu0 %v382
        %v384 = vpop.xlane.xlu0 %383
        %v385 = vsel %vm366, %v358, 0.0
        %386 = vadd.xlane.f32.xlu0 %v385
        %v387 = vpop.xlane.xlu0 %386
        %v388 = vsel %vm366, %v363, 0.0
        %389 = vadd.xlane.f32.xlu0 %v388
        %v390 = vpop.xlane.xlu0 %389
        %v391 = vrcp.pop 32.0
        %v392 = vmul.f32 %v369, %v391
        %v393 = vmul.f32 %v372, %v391
        %v394 = vmul.f32 %v375, %v391
        %v395 = vmul.f32 %v378, %v391
        %v396 = vmul.f32 %v381, %v391
        %v397 = vmul.f32 %v384, %v391
        %v398 = vmul.f32 %v387, %v391
        %v399 = vmul.f32 %v390, %v391
        %v400 = vmul.f32 %v328, %v328
        %v401 = vmul.f32 %v333, %v333
        %v402 = vmul.f32 %v338, %v338
        %v403 = vmul.f32 %v343, %v343
        %v404 = vmul.f32 %v348, %v348
        %v405 = vmul.f32 %v353, %v353
        %v406 = vmul.f32 %v358, %v358
        %v407 = vmul.f32 %v363, %v363
        %v408 = vsel %vm366, %v400, 0.0
        %409 = vadd.xlane.f32.xlu0 %v408
        %v410 = vpop.xlane.xlu0 %409
        %v411 = vsel %vm366, %v401, 0.0
        %412 = vadd.xlane.f32.xlu0 %v411
        %v413 = vpop.xlane.xlu0 %412
        %v414 = vsel %vm366, %v402, 0.0
        %415 = vadd.xlane.f32.xlu0 %v414
        %v416 = vpop.xlane.xlu0 %415
        %v417 = vsel %vm366, %v403, 0.0
        %418 = vadd.xlane.f32.xlu0 %v417
        %v419 = vpop.xlane.xlu0 %418
        %v420 = vsel %vm366, %v404, 0.0
        %421 = vadd.xlane.f32.xlu0 %v420
        %v422 = vpop.xlane.xlu0 %421
        %v423 = vsel %vm366, %v405, 0.0
        %424 = vadd.xlane.f32.xlu0 %v423
        %v425 = vpop.xlane.xlu0 %424
        %v426 = vsel %vm366, %v406, 0.0
        %427 = vadd.xlane.f32.xlu0 %v426
        %v428 = vpop.xlane.xlu0 %427
        %v429 = vsel %vm366, %v407, 0.0
        %430 = vadd.xlane.f32.xlu0 %v429
        %v431 = vpop.xlane.xlu0 %430
        %v432 = vmul.f32 %v410, %v391
        %v433 = vmul.f32 %v413, %v391
        %v434 = vmul.f32 %v416, %v391
        %v435 = vmul.f32 %v419, %v391
        %v436 = vmul.f32 %v422, %v391
        %v437 = vmul.f32 %v425, %v391
        %v438 = vmul.f32 %v428, %v391
        %v439 = vmul.f32 %v431, %v391
        %v440 = vmul.f32 %v392, %v392
        %v441 = vmul.f32 %v393, %v393
        %v442 = vmul.f32 %v394, %v394
        %v443 = vmul.f32 %v395, %v395
        %v444 = vmul.f32 %v396, %v396
        %v445 = vmul.f32 %v397, %v397
        %v446 = vmul.f32 %v398, %v398
        %v447 = vmul.f32 %v399, %v399
        %v448 = vsub.f32 %v432, %v440
        %v449 = vsub.f32 %v433, %v441
        %v450 = vsub.f32 %v434, %v442
        %v451 = vsub.f32 %v435, %v443
        %v452 = vsub.f32 %v436, %v444
        %v453 = vsub.f32 %v437, %v445
        %v454 = vsub.f32 %v438, %v446
        %v455 = vsub.f32 %v439, %v447
        %v456 = vmax.f32 %v448, 0.0
        %v457 = vmax.f32 %v449, 0.0
        %v458 = vmax.f32 %v450, 0.0
        %v459 = vmax.f32 %v451, 0.0
        %v460 = vmax.f32 %v452, 0.0
        %v461 = vmax.f32 %v453, 0.0
        %v462 = vmax.f32 %v454, 0.0
        %v463 = vmax.f32 %v455, 0.0
        %v464 = vadd.f32 %v456, 1e-06
        %v465 = vadd.f32 %v457, 1e-06
        %v466 = vadd.f32 %v458, 1e-06
        %v467 = vadd.f32 %v459, 1e-06
        %v468 = vadd.f32 %v460, 1e-06
        %v469 = vadd.f32 %v461, 1e-06
        %v470 = vadd.f32 %v462, 1e-06
        %v471 = vadd.f32 %v463, 1e-06
        %v472 = vrsqrt.pop %v464
        %v473 = vrsqrt.pop %v465
        %v474 = vrsqrt.pop %v466
        %v475 = vrsqrt.pop %v467
        %v476 = vrsqrt.pop %v468
        %v477 = vrsqrt.pop %v469
        %v478 = vrsqrt.pop %v470
        %v479 = vrsqrt.pop %v471
        %v480 = vld [vmem:[%s2] sm:$0x1]
        %v481 = vld [vmem:[%s3] sm:$0x1]
        %v482 = vsub.f32 %v328, %v392
        %v483 = vsub.f32 %v333, %v393
        %v484 = vsub.f32 %v338, %v394
        %v485 = vsub.f32 %v343, %v395
        %v486 = vsub.f32 %v348, %v396
        %v487 = vsub.f32 %v353, %v397
        %v488 = vsub.f32 %v358, %v398
        %v489 = vsub.f32 %v363, %v399
        %v490 = vmul.f32 %v482, %v472
        %v491 = vmul.f32 %v483, %v473
        %v492 = vmul.f32 %v484, %v474
        %v493 = vmul.f32 %v485, %v475
        %v494 = vmul.f32 %v486, %v476
        %v495 = vmul.f32 %v487, %v477
        %v496 = vmul.f32 %v488, %v478
        %v497 = vmul.f32 %v489, %v479
        %v499 = vlaneseq
        %v500 = vshrl.u32 %v499, 7
        %v501 = vsub.s32 0, %v500
        %v502 = vrot.slane %v480, %v501
        %v504 = vmul.f32 %v490, %v502
        %v505 = vmul.f32 %v491, %v502
        %v506 = vmul.f32 %v492, %v502
        %v507 = vmul.f32 %v493, %v502
        %v508 = vmul.f32 %v494, %v502
        %v509 = vmul.f32 %v495, %v502
        %v510 = vmul.f32 %v496, %v502
        %v511 = vmul.f32 %v497, %v502
        %v513 = vlaneseq
        %v514 = vshrl.u32 %v513, 7
        %v515 = vsub.s32 0, %v514
        %v516 = vrot.slane %v481, %v515
        %v518 = vadd.f32 %v504, %v516
        %v519 = vadd.f32 %v505, %v516
        %v520 = vadd.f32 %v506, %v516
        %v521 = vadd.f32 %v507, %v516
        %v522 = vadd.f32 %v508, %v516
        %v523 = vadd.f32 %v509, %v516
        %v524 = vadd.f32 %v510, %v516
        %v525 = vadd.f32 %v511, %v516
        %526 = vst.msk [vmem:[%s218] sm:$0xff] %vm366, %v518
        %527 = vst.msk [vmem:[%s218 + $0x8] sm:$0xff] %vm366, %v519
        %528 = vst.msk [vmem:[%s218 + $0x10] sm:$0xff] %vm366, %v520
        %529 = vst.msk [vmem:[%s218 + $0x18] sm:$0xff] %vm366, %v521
        %530 = vst.msk [vmem:[%s218 + $0x20] sm:$0xff] %vm366, %v522
        %531 = vst.msk [vmem:[%s218 + $0x28] sm:$0xff] %vm366, %v523
        %532 = vst.msk [vmem:[%s218 + $0x30] sm:$0xff] %vm366, %v524
        %533 = vst.msk [vmem:[%s218 + $0x38] sm:$0xff] %vm366, %v525
        %s534 = smul.u32 8, %s18
        %p535 = scmp.lt.s32.totalorder %s534, 63
        %s536 = scalar_select %p535, %s534, 63
        %s537 = smul.addr %s536, 8
        %s538 = scalar_lea.vmem %s4, %s537
        // Predicated region
        $region41: #{sam_vision_tower_forward.1} parent=35 // pred_check
          %p539 = pneg %p125
        $region42: #{sam_vision_tower_forward.1} parent=35 // pred_check_branch
          %541 = sbr.rel (%p539) target = $region44
        $region43: #{sam_vision_tower_forward.1} parent=35 // pred_region
          %s542 = smul.u32 8, %s18
        $region44: #{sam_vision_tower_forward.1} parent=35 // pred_fallthru
          _
      $region36: #{sam_vision_tower_forward.1} parent=5 // pred_fallthru
        _
      %p543 = scmp.le.s32.totalorder 2, %s13
      // Predicated region
      $region45: #{sam_vision_tower_forward.1} parent=5 // pred_check
        %p544 = pneg %p543
      $region46: #{sam_vision_tower_forward.1} parent=5 // pred_check_branch
        %546 = sbr.rel (%p544) target = $region48
      $region47: #{sam_vision_tower_forward.1} parent=5 // pred_region
        %s547 = ssub.s32 %s13, 2
        // Predicated region
        $region49: #{sam_vision_tower_forward.1} parent=47 // pred_check
          %p548 = pneg %p131
        $region50: #{sam_vision_tower_forward.1} parent=47 // pred_check_branch
          %550 = sbr.rel (%p548) target = $region52
        $region51: #{sam_vision_tower_forward.1} parent=47 // pred_region
          %s551 = smul.u32 8, %s19
          %p552 = scmp.lt.s32.totalorder %s551, 63
          %s553 = scalar_select %p552, %s551, 63
          %s554 = smul.addr %s553, 8
          %s555 = scalar_lea.vmem %s4, %s554
        $region52: #{sam_vision_tower_forward.1} parent=47 // pred_fallthru
          _
      $region48: #{sam_vision_tower_forward.1} parent=5 // pred_fallthru
        _
    $region6: #{sam_vision_tower_forward.1} parent=1 // loop_footer
      %s17 = sadd.s32 1, %s13
    $region7: #{sam_vision_tower_forward.1} parent=1 // loop_footer_branch
      %12 = sbr.rel target = $region3
    $region8: #{sam_vision_tower_forward.1} parent=1 // loop_exit
      _
    %556 = vsyncpa [#allocation3], 1
    %s557 = scalar_lea.sflag [#allocation3], 1
    %558 = vsyncpa %s557, 1

</llo_original>
